<compile_context>
chip_gen: v6e
topology: v6e:2x2x1
jax: 0.10.0
libtpu: 0.0.40
codegen_flags: <defaults>
</compile_context>

<pallas_src>
import functools

import jax
import jax.numpy as jnp
from jax.experimental import pallas as pl
from jax.experimental.pallas import tpu as pltpu


def _round_up(v, m):
    return (v + m - 1) // m * m


def _vmem_limit_bytes():
    # Per-generation VMEM budget: leave headroom under the physical capacity
    # (v7x: 64 MiB -> ~48 MiB; v5e/v6e: 128 MiB -> capped at 100 MiB).
    try:
        cap = pltpu.get_tpu_info().vmem_capacity_bytes
    except Exception:
        cap = 64 * 1024 * 1024
    return int(max(32 * 1024 * 1024,
                   min(cap - 16 * 1024 * 1024, 100 * 1024 * 1024)))


# ---------------------------------------------------------------------------
# Phase 1: per-edge gating   xe = lin_rbf(rbf) * x          (edge-parallel)
# ---------------------------------------------------------------------------
def _edge_gate_kernel(x_ref, rbf_ref, w_rbf_ref, xe_ref):
    # lin_rbf on the MXU (the MXU is otherwise idle in this phase, so even an
    # underfilled K=num_radial matmul beats R broadcast sweeps on the VPU/XLU).
    g = jnp.dot(rbf_ref[...], w_rbf_ref[...], preferred_element_type=jnp.float32)
    # bf16 master copy for the phase-2 MXU segment-sum matmul.
    xe_ref[...] = (g * x_ref[...]).astype(jnp.bfloat16)


# ---------------------------------------------------------------------------
# Phase 2: CSR-restricted segment-sum reduction + node-tiled MLP
# ---------------------------------------------------------------------------
def _scatter_mlp_kernel(lo_ref, cnt_ref, idx_ref, xe_ref, w_up_ref, w_lins_ref,
                        b_lins_ref, w_out_ref, out_ref, acc_ref,
                        *, num_layers, tile_n):
    n = pl.program_id(0)
    e = pl.program_id(1)

    @pl.when(e == 0)
    def _init():
        acc_ref[...] = jnp.zeros_like(acc_ref)

    # ---- segment-sum of this (clamped) edge tile into the node-tile acc ----
    # Only the first cnt[n] inner steps carry edges for this node tile; the
    # remaining steps re-present the last valid tile (index_map clamps), so
    # they must be skipped to avoid double counting.
    @pl.when(e < cnt_ref[n])
    def _accumulate():
        idx = idx_ref[...]                                     # [1, tE] int32
        node_ids = (n * tile_n +
                    jax.lax.broadcasted_iota(jnp.int32, (tile_n, 1), 0))
        onehot = (node_ids == idx).astype(jnp.bfloat16)        # exact 0/1
        acc_ref[...] += jnp.dot(onehot, xe_ref[...],           # bf16 -> f32 acc
                                preferred_element_type=jnp.float32)

    # ---- last inner step: lin_up -> MLP (SiLU, f32) -> lin_out -------------
    @pl.when(e == pl.num_programs(1) - 1)
    def _finalize():
        xn = jnp.dot(acc_ref[...].astype(jnp.bfloat16), w_up_ref[...],
                     preferred_element_type=jnp.float32)            # [tN, D]
        for l in range(num_layers):
            h = jnp.dot(xn.astype(jnp.bfloat16), w_lins_ref[l],
                        preferred_element_type=jnp.float32) + b_lins_ref[l]
            xn = h * jax.nn.sigmoid(h)                               # SiLU, f32
        out_ref[...] = jnp.dot(xn.astype(jnp.bfloat16), w_out_ref[...],
                               preferred_element_type=jnp.float32)   # lane-dense


# ---------------------------------------------------------------------------
# Wrapper
# ---------------------------------------------------------------------------
def output_pp_block(x, rbf, i, params, *, num_nodes,
                    tile_e=None, tile_n=None, max_edge_tiles=None):
    """x: [E, H] f32, rbf: [E, R] f32, i: [E] int32 edge -> node index."""
    E, H = x.shape
    R = rbf.shape[1]
    D = params["w_up"].shape[1]
    O = params["w_out"].shape[1]
    L = params["w_lins"].shape[0]

    # Edge tile: multiple of 128 (lane dim of idx / one-hot).  Node tile:
    # multiple of 8 (sublane); <= 256 keeps the one-hot matmul under the HBM
    # roofline on all generations and the finalize intermediates modest (v5e).
    if tile_e is None:
        tile_e = min(1024, _round_up(E, 128))
    if tile_n is None:
        tile_n = min(256, _round_up(num_nodes, 8))
        # v7x megacore: prefer >= 2 node tiles so the "parallel" axis shards.
        if _round_up(num_nodes, 8) <= tile_n and num_nodes > 8:
            tile_n = max(8, _round_up((num_nodes + 1) // 2, 8))
    assert tile_e % 128 == 0 and tile_n % 8 == 0

    E_pad = _round_up(E, tile_e)
    N_pad = _round_up(num_nodes, tile_n)
    O_pad = _round_up(O, 128)                          # lane-dense output store

    f32, bf16 = jnp.float32, jnp.bfloat16

    # ---- CSR preparation: sort edges by destination node -------------------
    order = jnp.argsort(i)
    i_s = i[order].astype(jnp.int32)
    x_s = jnp.pad(x[order].astype(f32), ((0, E_pad - E), (0, 0)))
    rbf_s = jnp.pad(rbf[order].astype(f32), ((0, E_pad - E), (0, 0)))
    # Padded edges get an out-of-range node id (and zero features) -> no-op.
    idx_s = jnp.pad(i_s, (0, E_pad - E), constant_values=N_pad)

    num_node_tiles = N_pad // tile_n
    num_edge_tiles = E_pad // tile_e

    # Per-node-tile first edge-tile index and number of edge tiles to visit.
    boundaries = jnp.arange(num_node_tiles + 1, dtype=jnp.int32) * tile_n
    edge_pos = jnp.searchsorted(idx_s, boundaries).astype(jnp.int32)
    lo = jnp.minimum(edge_pos[:-1] // tile_e, num_edge_tiles - 1).astype(jnp.int32)
    hi = (edge_pos[1:] + tile_e - 1) // tile_e
    cnt = jnp.where(edge_pos[1:] > edge_pos[:-1], hi - lo, 0).astype(jnp.int32)

    if max_edge_tiles is None:
        # Static grid extent; derived from concrete data (pass explicitly
        # when this wrapper must be jitted).
        max_edge_tiles = max(int(jax.device_get(jnp.max(cnt))), 1)

    idx_p = idx_s.reshape(1, E_pad)

    w_rbf = params["w_rbf"].astype(f32)                # phase-1 matmul stays f32
    w_up = params["w_up"].astype(bf16)
    w_lins = params["w_lins"].astype(bf16)
    b_lins = params["b_lins"].astype(f32)
    w_out = jnp.pad(params["w_out"].astype(bf16), ((0, 0), (0, O_pad - O)))

    vmem_cap = _vmem_limit_bytes()

    # ---- phase 1: edge gating (pure streaming; biggest tile dividing E_pad) -
    tile_e_gate = tile_e
    for k in range(min(num_edge_tiles, max(1, 2048 // tile_e)), 0, -1):
        if num_edge_tiles % k == 0:
            tile_e_gate = tile_e * k
            break

    xe = pl.pallas_call(
        _edge_gate_kernel,
        out_shape=jax.ShapeDtypeStruct((E_pad, H), bf16),
        grid=(E_pad // tile_e_gate,),
        in_specs=[
            pl.BlockSpec((tile_e_gate, H), lambda e: (e, 0)),
            pl.BlockSpec((tile_e_gate, R), lambda e: (e, 0)),
            pl.BlockSpec((R, H), lambda e: (0, 0)),
        ],
        out_specs=pl.BlockSpec((tile_e_gate, H), lambda e: (e, 0)),
        compiler_params=pltpu.CompilerParams(
            dimension_semantics=("parallel",),
            vmem_limit_bytes=vmem_cap),
    )(x_s, rbf_s, w_rbf)

    # ---- phase 2: CSR segment-sum reduction + node MLP ----------------------
    def _edge_tile(n, e, lo_ref, cnt_ref):
        # Clamp to the last valid tile for this node tile so trailing inner
        # steps revisit the same block (no extra DMA) and are skipped by the
        # in-kernel pl.when guard.
        return lo_ref[n] + jnp.minimum(e, jnp.maximum(cnt_ref[n] - 1, 0))

    out_pad = pl.pallas_call(
        functools.partial(_scatter_mlp_kernel, num_layers=L, tile_n=tile_n),
        out_shape=jax.ShapeDtypeStruct((N_pad, O_pad), f32),
        grid_spec=pltpu.PrefetchScalarGridSpec(
            num_scalar_prefetch=2,
            grid=(num_node_tiles, max_edge_tiles),
            in_specs=[
                pl.BlockSpec((1, tile_e),
                             lambda n, e, lo, cnt: (0, _edge_tile(n, e, lo, cnt))),
                pl.BlockSpec((tile_e, H),
                             lambda n, e, lo, cnt: (_edge_tile(n, e, lo, cnt), 0)),
                pl.BlockSpec((H, D), lambda n, e, lo, cnt: (0, 0)),
                pl.BlockSpec((L, D, D), lambda n, e, lo, cnt: (0, 0, 0)),
                pl.BlockSpec((L, 1, D), lambda n, e, lo, cnt: (0, 0, 0)),
                pl.BlockSpec((D, O_pad), lambda n, e, lo, cnt: (0, 0)),
            ],
            out_specs=pl.BlockSpec((tile_n, O_pad),
                                   lambda n, e, lo, cnt: (n, 0)),
            scratch_shapes=[pltpu.VMEM((tile_n, H), f32)]),
        compiler_params=pltpu.CompilerParams(
            dimension_semantics=("parallel", "arbitrary"),
            vmem_limit_bytes=vmem_cap),
    )(lo, cnt, idx_p, xe, w_up, w_lins, b_lins, w_out)

    return out_pad[:num_nodes, :O]


# ---------------------------------------------------------------------------
# Deterministic synthetic init (shapes match the torch module; weights stored
# pre-transposed as [in, out]).
# ---------------------------------------------------------------------------
def init_params(key, num_radial, hidden, out_emb, out_ch, num_layers):
    ks = jax.random.split(key, 5 + num_layers)
    scale = 0.1
    w_rbf = scale * jax.random.normal(ks[0], (num_radial, hidden), jnp.float32)
    w_up = scale * jax.random.normal(ks[1], (hidden, out_emb), jnp.float32)
    w_lins = jnp.stack([scale * jax.random.normal(ks[2 + l], (out_emb, out_emb),
                                                  jnp.float32)
                        for l in range(num_layers)])               # [L, D, D]
    # NOTE: torch zero-fills b_lins and w_out; small nonzero values are used
    # here only so the self-test exercises those paths (semantics unchanged).
    b_lins = 0.05 * jax.random.normal(ks[2 + num_layers],
                                      (num_layers, 1, out_emb), jnp.float32)
    w_out = scale * jax.random.normal(ks[3 + num_layers],
                                      (out_emb, out_ch), jnp.float32)
    return dict(w_rbf=w_rbf, w_up=w_up, w_lins=w_lins, b_lins=b_lins,
                w_out=w_out)


def reference_forward(x, rbf, i, params, *, num_nodes):
    g = rbf @ params["w_rbf"]
    xe = g * x
    xn = jax.ops.segment_sum(xe, i, num_segments=num_nodes)
    xn = xn @ params["w_up"]
    for l in range(params["w_lins"].shape[0]):
        h = xn @ params["w_lins"][l] + params["b_lins"][l]
        xn = jax.nn.silu(h)
    return xn @ params["w_out"]


if __name__ == "__main__":
    # Small shapes, but sized so the CSR grid actually tiles (multiple edge
    # tiles, multiple node tiles, boundary-shared edge tiles) and exercises
    # the accumulator init / guarded-accumulate / finalize path.
    num_edges = 300
    num_nodes = 40
    num_radial = 6
    hidden_channels = 64
    out_emb_channels = 128
    out_channels = 16
    num_layers = 3

    key = jax.random.PRNGKey(0)
    k_x, k_rbf, k_i, k_p = jax.random.split(key, 4)

    x = jax.random.normal(k_x, (num_edges, hidden_channels), jnp.float32)
    rbf = jax.random.normal(k_rbf, (num_edges, num_radial), jnp.float32)
    i = jax.random.randint(k_i, (num_edges,), 0, num_nodes, jnp.int32)
    params = init_params(k_p, num_radial, hidden_channels,
                         out_emb_channels, out_channels, num_layers)

    ref = reference_forward(x, rbf, i, params, num_nodes=num_nodes)

    # Run 1: explicit small tiles -> 3 edge tiles x 3 node tiles, max 2 edge
    # tiles per node tile (exercises the CSR guard and shared boundary tiles).
    out_small = output_pp_block(x, rbf, i, params, num_nodes=num_nodes,
                                tile_e=128, tile_n=16)
    out_small = jax.block_until_ready(out_small)

    # Run 2: default (auto-derived) tile sizes.
    out_auto = output_pp_block(x, rbf, i, params, num_nodes=num_nodes)
    out_auto = jax.block_until_ready(out_auto)

    for out in (out_small, out_auto):
        assert out.shape == (num_nodes, out_channels)
        max_err = jnp.max(jnp.abs(out - ref))
        # bf16 matmul inputs with f32 accumulation vs. all-f32 reference.
        assert jnp.allclose(out, ref, atol=5e-2, rtol=5e-2), f"max err {max_err}"

    print("KERNEL_OK")
</pallas_src>

<mosaic_0001>
module attributes {stable_mosaic.version = 11 : i64} {
  func.func @_edge_gate_kernel(%arg0: i32, %arg1: memref<384x64xf32, #tpu.memory_space<vmem>>, %arg2: memref<384x6xf32, #tpu.memory_space<vmem>>, %arg3: memref<6x64xf32, #tpu.memory_space<vmem>>, %arg4: memref<384x64xbf16, #tpu.memory_space<vmem>>) attributes {dimension_semantics = [#tpu.dimension_semantics<parallel>], iteration_bounds = array<i64: 1>, scalar_prefetch = 0 : i64, scratch_operands = 0 : i64, tpu.core_type = #tpu.core_type<tc>, window_params = [{transform_indices = @transform_0, window_bounds = array<i64: 384, 64>}, {transform_indices = @transform_1, window_bounds = array<i64: 384, 6>}, {pipeline_mode = #tpu.pipeline_mode<synchronous>, transform_indices = @transform_2, window_bounds = array<i64: 6, 64>}, {transform_indices = @transform_3, window_bounds = array<i64: 384, 64>}]} {
    %c0 = arith.constant 0 : index
    %c0_0 = arith.constant 0 : index
    %0 = vector.load %arg2[%c0, %c0_0] : memref<384x6xf32, #tpu.memory_space<vmem>>, vector<384x6xf32>
    %c0_1 = arith.constant 0 : index
    %c0_2 = arith.constant 0 : index
    %1 = vector.load %arg3[%c0_1, %c0_2] : memref<6x64xf32, #tpu.memory_space<vmem>>, vector<6x64xf32>
    %cst = arith.constant dense<0.000000e+00> : vector<384x64xf32>
    %2 = tpu.matmul %0, %1, %cst {dimension_numbers = #tpu.dot_dimension_numbers<[1], [0], [0], [1], [0, 0, 1, 1], [], []>} : vector<384x6xf32>, vector<6x64xf32>, vector<384x64xf32> -> vector<384x64xf32>
    %c0_3 = arith.constant 0 : index
    %c0_4 = arith.constant 0 : index
    %3 = vector.load %arg1[%c0_3, %c0_4] : memref<384x64xf32, #tpu.memory_space<vmem>>, vector<384x64xf32>
    %4 = arith.mulf %2, %3 : vector<384x64xf32>
    %5 = arith.truncf %4 : vector<384x64xf32> to vector<384x64xbf16>
    %c0_5 = arith.constant 0 : index
    %c0_6 = arith.constant 0 : index
    %6 = vector.load %arg4[%c0_5, %c0_6] : memref<384x64xbf16, #tpu.memory_space<vmem>>, vector<384x64xbf16>
    tpu.vector_store %arg4[%c0_5, %c0_6], %5 {strides = array<i32>} : memref<384x64xbf16, #tpu.memory_space<vmem>>, vector<384x64xbf16>,
    return
  }
  func.func @transform_0(%arg0: i32) -> (i32, i32) {
    %c0_i32 = arith.constant 0 : i32
    %c0_i32_0 = arith.constant 0 : i32
    return %arg0, %c0_i32 : i32, i32
  }
  func.func @transform_1(%arg0: i32) -> (i32, i32) {
    %c0_i32 = arith.constant 0 : i32
    %c0_i32_0 = arith.constant 0 : i32
    return %arg0, %c0_i32 : i32, i32
  }
  func.func @transform_2(%arg0: i32) -> (i32, i32) {
    %c0_i32 = arith.constant 0 : i32
    %c0_i32_0 = arith.constant 0 : i32
    %c0_i32_1 = arith.constant 0 : i32
    return %c0_i32, %c0_i32_0 : i32, i32
  }
  func.func @transform_3(%arg0: i32) -> (i32, i32) {
    %c0_i32 = arith.constant 0 : i32
    %c0_i32_0 = arith.constant 0 : i32
    return %arg0, %c0_i32 : i32, i32
  }
}

</mosaic_0001>

<llo_original>
// kernel: tpu_custom_call.1
$region0: #{tpu_custom_call.1}
  #allocation0 [shape = 'u32[]', space=smem, size = 0x4, offset = 0x4, fixed_abs, tag = 'smem constant byte address 0x4 - core index']
  #allocation1 [shape = 'u32[144,128]{1,0:T(1,128)}', space=vmem, size = 0x12000, scoped, tag = 'internal scratch']
  %s0 = inlined_call_operand.vmem [shape: f32[384,64], index: 0, kind: input, shape index: {}]
  %s1 = inlined_call_operand.vmem [shape: f32[384,6], index: 1, kind: input, shape index: {}]
  %s2 = inlined_call_operand.vmem [shape: f32[6,64], index: 2, kind: input, shape index: {}]
  %s3 = inlined_call_operand.vmem [shape: bf16[384,64], index: 3, kind: output, shape index: {}]
  %s4 = sld [smem:[#allocation0]]
  $region22: #{tpu_custom_call.1} parent=0
    _
  %s6 = ssub.s32 1, %s4
  %s7 = scalar_select 0, %s6, %s4
  // Predicated region
  $region2: #{tpu_custom_call.1} parent=0 // pred_check
    _
  $region3: #{tpu_custom_call.1} parent=0 // pred_check_branch
    %9 = sbr.rel (0) target = $region5
  $region4: #{tpu_custom_call.1} parent=0 // pred_region
    _
  $region5: #{tpu_custom_call.1} parent=0 // pred_fallthru
    _
  // Predicated region
  $region6: #{tpu_custom_call.1} parent=0 // pred_check
    _
  $region7: #{tpu_custom_call.1} parent=0 // pred_check_branch
    %11 = sbr.rel (0) target = $region9
  $region8: #{tpu_custom_call.1} parent=0 // pred_region
    _
  $region9: #{tpu_custom_call.1} parent=0 // pred_fallthru
    _
  // Predicated region
  $region10: #{tpu_custom_call.1} parent=0 // pred_check
    _
  $region11: #{tpu_custom_call.1} parent=0 // pred_check_branch
    %13 = sbr.rel (0) target = $region13
  $region12: #{tpu_custom_call.1} parent=0 // pred_region
    _
  $region13: #{tpu_custom_call.1} parent=0 // pred_fallthru
    _
  %v14 = vld [vmem:[%s1] sm:$0xff]
  %v15 = vld [vmem:[%s1 + $0x8] sm:$0xff]
  %v16 = vld [vmem:[%s1 + $0x10] sm:$0xff]
  %v17 = vld [vmem:[%s1 + $0x18] sm:$0xff]
  %v18 = vld [vmem:[%s1 + $0x20] sm:$0xff]
  %v19 = vld [vmem:[%s1 + $0x28] sm:$0xff]
  %v20 = vld [vmem:[%s1 + $0x30] sm:$0xff]
  %v21 = vld [vmem:[%s1 + $0x38] sm:$0xff]
  %v22 = vld [vmem:[%s1 + $0x40] sm:$0xff]
  %v23 = vld [vmem:[%s1 + $0x48] sm:$0xff]
  %v24 = vld [vmem:[%s1 + $0x50] sm:$0xff]
  %v25 = vld [vmem:[%s1 + $0x58] sm:$0xff]
  %v26 = vld [vmem:[%s1 + $0x60] sm:$0xff]
  %v27 = vld [vmem:[%s1 + $0x68] sm:$0xff]
  %v28 = vld [vmem:[%s1 + $0x70] sm:$0xff]
  %v29 = vld [vmem:[%s1 + $0x78] sm:$0xff]
  %v30 = vld [vmem:[%s1 + $0x80] sm:$0xff]
  %v31 = vld [vmem:[%s1 + $0x88] sm:$0xff]
  %v32 = vld [vmem:[%s1 + $0x90] sm:$0xff]
  %v33 = vld [vmem:[%s1 + $0x98] sm:$0xff]
  %v34 = vld [vmem:[%s1 + $0xa0] sm:$0xff]
  %v35 = vld [vmem:[%s1 + $0xa8] sm:$0xff]
  %v36 = vld [vmem:[%s1 + $0xb0] sm:$0xff]
  %v37 = vld [vmem:[%s1 + $0xb8] sm:$0xff]
  %v38 = vld [vmem:[%s1 + $0xc0] sm:$0xff]
  %v39 = vld [vmem:[%s1 + $0xc8] sm:$0xff]
  %v40 = vld [vmem:[%s1 + $0xd0] sm:$0xff]
  %v41 = vld [vmem:[%s1 + $0xd8] sm:$0xff]
  %v42 = vld [vmem:[%s1 + $0xe0] sm:$0xff]
  %v43 = vld [vmem:[%s1 + $0xe8] sm:$0xff]
  %v44 = vld [vmem:[%s1 + $0xf0] sm:$0xff]
  %v45 = vld [vmem:[%s1 + $0xf8] sm:$0xff]
  %v46 = vld [vmem:[%s1 + $0x100] sm:$0xff]
  %v47 = vld [vmem:[%s1 + $0x108] sm:$0xff]
  %v48 = vld [vmem:[%s1 + $0x110] sm:$0xff]
  %v49 = vld [vmem:[%s1 + $0x118] sm:$0xff]
  %v50 = vld [vmem:[%s1 + $0x120] sm:$0xff]
  %v51 = vld [vmem:[%s1 + $0x128] sm:$0xff]
  %v52 = vld [vmem:[%s1 + $0x130] sm:$0xff]
  %v53 = vld [vmem:[%s1 + $0x138] sm:$0xff]
  %v54 = vld [vmem:[%s1 + $0x140] sm:$0xff]
  %v55 = vld [vmem:[%s1 + $0x148] sm:$0xff]
  %v56 = vld [vmem:[%s1 + $0x150] sm:$0xff]
  %v57 = vld [vmem:[%s1 + $0x158] sm:$0xff]
  %v58 = vld [vmem:[%s1 + $0x160] sm:$0xff]
  %v59 = vld [vmem:[%s1 + $0x168] sm:$0xff]
  %v60 = vld [vmem:[%s1 + $0x170] sm:$0xff]
  %v61 = vld [vmem:[%s1 + $0x178] sm:$0xff]
  %v62 = vld [vmem:[%s2] sm:$0x3f]
  %vm63 = vcmask 48128
  %v65 = vsel %vm63, %v14, 0
  %v68 = vsel %vm63, %v15, 0
  %v71 = vsel %vm63, %v16, 0
  %v74 = vsel %vm63, %v17, 0
  %v77 = vsel %vm63, %v18, 0
  %v80 = vsel %vm63, %v19, 0
  %v83 = vsel %vm63, %v20, 0
  %v86 = vsel %vm63, %v21, 0
  %v89 = vsel %vm63, %v22, 0
  %v92 = vsel %vm63, %v23, 0
  %v95 = vsel %vm63, %v24, 0
  %v98 = vsel %vm63, %v25, 0
  %v101 = vsel %vm63, %v26, 0
  %v104 = vsel %vm63, %v27, 0
  %v107 = vsel %vm63, %v28, 0
  %v110 = vsel %vm63, %v29, 0
  %v113 = vsel %vm63, %v30, 0
  %v116 = vsel %vm63, %v31, 0
  %v119 = vsel %vm63, %v32, 0
  %v122 = vsel %vm63, %v33, 0
  %v125 = vsel %vm63, %v34, 0
  %v128 = vsel %vm63, %v35, 0
  %v131 = vsel %vm63, %v36, 0
  %v134 = vsel %vm63, %v37, 0
  %v137 = vsel %vm63, %v38, 0
  %v140 = vsel %vm63, %v39, 0
  %v143 = vsel %vm63, %v40, 0
  %v146 = vsel %vm63, %v41, 0
  %v149 = vsel %vm63, %v42, 0
  %v152 = vsel %vm63, %v43, 0
  %v155 = vsel %vm63, %v44, 0
  %v158 = vsel %vm63, %v45, 0
  %v161 = vsel %vm63, %v46, 0
  %v164 = vsel %vm63, %v47, 0
  %v167 = vsel %vm63, %v48, 0
  %v170 = vsel %vm63, %v49, 0
  %v173 = vsel %vm63, %v50, 0
  %v176 = vsel %vm63, %v51, 0
  %v179 = vsel %vm63, %v52, 0
  %v182 = vsel %vm63, %v53, 0
  %v185 = vsel %vm63, %v54, 0
  %v188 = vsel %vm63, %v55, 0
  %v191 = vsel %vm63, %v56, 0
  %v194 = vsel %vm63, %v57, 0
  %v197 = vsel %vm63, %v58, 0
  %v200 = vsel %vm63, %v59, 0
  %v203 = vsel %vm63, %v60, 0
  %v206 = vsel %vm63, %v61, 0
  %vm208 = vcmask 1045504
  %v210 = vsel %vm208, %v62, 0
  %212 = vmatprep.subr.mxu0 0.0
  %213 = vmatpush1.msra.mxu0 0.0
  %214 = vmatprep.subr.mxu0 0.0
  %215 = vmatpush1.msra.mxu0 0.0
  %216 = vmatprep.subr.mxu0 0.0
  %217 = vmatpush1.msra.mxu0 0.0
  %218 = vmatprep.subr.mxu0 0.0
  %219 = vmatpush1.msra.mxu0 0.0
  %220 = vmatprep.subr.mxu0 0.0
  %221 = vmatpush1.msra.mxu0 0.0
  %222 = vmatprep.subr.mxu0 0.0
  %223 = vmatpush1.msra.mxu0 0.0
  %224 = vmatprep.subr.mxu0 0.0
  %225 = vmatpush1.msra.mxu0 0.0
  %226 = vmatprep.subr.mxu0 0.0
  %227 = vmatpush1.msra.mxu0 0.0
  %228 = vmatprep.subr.mxu0 0.0
  %229 = vmatpush1.msra.mxu0 0.0
  %230 = vmatprep.subr.mxu0 0.0
  %231 = vmatpush1.msra.mxu0 0.0
  %232 = vmatprep.subr.mxu0 0.0
  %233 = vmatpush1.msra.mxu0 0.0
  %234 = vmatprep.subr.mxu0 0.0
  %235 = vmatpush1.msra.mxu0 0.0
  %236 = vmatprep.subr.mxu0 0.0
  %237 = vmatpush1.msra.mxu0 0.0
  %238 = vmatprep.subr.mxu0 0.0
  %239 = vmatpush1.msra.mxu0 0.0
  %240 = vmatprep.subr.mxu0 0.0
  %241 = vmatpush1.msra.mxu0 0.0
  %242 = vmatprep.subr.mxu0 0.0
  %243 = vmatpush1.msra.mxu0 %v210
  %244 = vmatprep.subr.mxu0 0.0
  %245 = vmatpush2.msra.mxu0 0.0
  %246 = vmatprep.subr.mxu0 0.0
  %247 = vmatpush2.msra.mxu0 0.0
  %248 = vmatprep.subr.mxu0 0.0
  %249 = vmatpush2.msra.mxu0 0.0
  %250 = vmatprep.subr.mxu0 0.0
  %251 = vmatpush2.msra.mxu0 0.0
  %252 = vmatprep.subr.mxu0 0.0
  %253 = vmatpush2.msra.mxu0 0.0
  %254 = vmatprep.subr.mxu0 0.0
  %255 = vmatpush2.msra.mxu0 0.0
  %256 = vmatprep.subr.mxu0 0.0
  %257 = vmatpush2.msra.mxu0 0.0
  %258 = vmatprep.subr.mxu0 0.0
  %259 = vmatpush2.msra.mxu0 0.0
  %260 = vmatprep.subr.mxu0 0.0
  %261 = vmatpush2.msra.mxu0 0.0
  %262 = vmatprep.subr.mxu0 0.0
  %263 = vmatpush2.msra.mxu0 0.0
  %264 = vmatprep.subr.mxu0 0.0
  %265 = vmatpush2.msra.mxu0 0.0
  %266 = vmatprep.subr.mxu0 0.0
  %267 = vmatpush2.msra.mxu0 0.0
  %268 = vmatprep.subr.mxu0 0.0
  %269 = vmatpush2.msra.mxu0 0.0
  %270 = vmatprep.subr.mxu0 0.0
  %271 = vmatpush2.msra.mxu0 0.0
  %272 = vmatprep.subr.mxu0 0.0
  %273 = vmatpush2.msra.mxu0 0.0
  %274 = vmatprep.subr.mxu0 0.0
  %275 = vmatpush2.msra.mxu0 0.0
  %276 = vmatprep.mubr.f32.mxu0 0.0
  %277 = vmatmul.mubr.f32.gmra.mxu0 %v65
  %v278 = vpop.f32.mrf.mxu0
  %v279 = vadd.f32 0.0, %v278
  %v280 = vpop.f32.mrf.mxu0
  %281 = vmatprep.mubr.f32.mxu0 0.0
  %282 = vmatmul.mubr.f32.gmra.mxu0 %v68
  %v283 = vpop.f32.mrf.mxu0
  %v284 = vadd.f32 0.0, %v283
  %v285 = vpop.f32.mrf.mxu0
  %286 = vmatprep.mubr.f32.mxu0 0.0
  %287 = vmatmul.mubr.f32.gmra.mxu0 %v71
  %v288 = vpop.f32.mrf.mxu0
  %v289 = vadd.f32 0.0, %v288
  %v290 = vpop.f32.mrf.mxu0
  %291 = vmatprep.mubr.f32.mxu0 0.0
  %292 = vmatmul.mubr.f32.gmra.mxu0 %v74
  %v293 = vpop.f32.mrf.mxu0
  %v294 = vadd.f32 0.0, %v293
  %v295 = vpop.f32.mrf.mxu0
  %296 = vmatprep.mubr.f32.mxu0 0.0
  %297 = vmatmul.mubr.f32.gmra.mxu0 %v77
  %v298 = vpop.f32.mrf.mxu0
  %v299 = vadd.f32 0.0, %v298
  %v300 = vpop.f32.mrf.mxu0
  %301 = vmatprep.mubr.f32.mxu0 0.0
  %302 = vmatmul.mubr.f32.gmra.mxu0 %v80
  %v303 = vpop.f32.mrf.mxu0
  %v304 = vadd.f32 0.0, %v303
  %v305 = vpop.f32.mrf.mxu0
  %306 = vmatprep.mubr.f32.mxu0 0.0
  %307 = vmatmul.mubr.f32.gmra.mxu0 %v83
  %v308 = vpop.f32.mrf.mxu0
  %v309 = vadd.f32 0.0, %v308
  %v310 = vpop.f32.mrf.mxu0
  %311 = vmatprep.mubr.f32.mxu0 0.0
  %312 = vmatmul.mubr.f32.gmra.mxu0 %v86
  %v313 = vpop.f32.mrf.mxu0
  %v314 = vadd.f32 0.0, %v313
  %v315 = vpop.f32.mrf.mxu0
  %316 = vmatprep.mubr.f32.mxu0 0.0
  %317 = vmatmul.mubr.f32.gmra.mxu0 %v89
  %v318 = vpop.f32.mrf.mxu0
  %v319 = vadd.f32 0.0, %v318
  %v320 = vpop.f32.mrf.mxu0
  %321 = vmatprep.mubr.f32.mxu0 0.0
  %322 = vmatmul.mubr.f32.gmra.mxu0 %v92
  %v323 = vpop.f32.mrf.mxu0
  %v324 = vadd.f32 0.0, %v323
  %v325 = vpop.f32.mrf.mxu0
  %326 = vmatprep.mubr.f32.mxu0 0.0
  %327 = vmatmul.mubr.f32.gmra.mxu0 %v95
  %v328 = vpop.f32.mrf.mxu0
  %v329 = vadd.f32 0.0, %v328
  %v330 = vpop.f32.mrf.mxu0
  %331 = vmatprep.mubr.f32.mxu0 0.0
  %332 = vmatmul.mubr.f32.gmra.mxu0 %v98
  %v333 = vpop.f32.mrf.mxu0
  %v334 = vadd.f32 0.0, %v333
  %v335 = vpop.f32.mrf.mxu0
  %336 = vmatprep.mubr.f32.mxu0 0.0
  %337 = vmatmul.mubr.f32.gmra.mxu0 %v101
  %v338 = vpop.f32.mrf.mxu0
  %v339 = vadd.f32 0.0, %v338
  %v340 = vpop.f32.mrf.mxu0
  %341 = vmatprep.mubr.f32.mxu0 0.0
  %342 = vmatmul.mubr.f32.gmra.mxu0 %v104
  %v343 = vpop.f32.mrf.mxu0
  %v344 = vadd.f32 0.0, %v343
  %v345 = vpop.f32.mrf.mxu0
  %346 = vmatprep.mubr.f32.mxu0 0.0
  %347 = vmatmul.mubr.f32.gmra.mxu0 %v107
  %v348 = vpop.f32.mrf.mxu0
  %v349 = vadd.f32 0.0, %v348
  %v350 = vpop.f32.mrf.mxu0
  %351 = vmatprep.mubr.f32.mxu0 0.0
  %352 = vmatmul.mubr.f32.gmra.mxu0 %v110
  %v353 = vpop.f32.mrf.mxu0
  %v354 = vadd.f32 0.0, %v353
  %v355 = vpop.f32.mrf.mxu0
  %356 = vmatprep.mubr.f32.mxu0 0.0
  %357 = vmatmul.mubr.f32.gmra.mxu0 %v113
  %v358 = vpop.f32.mrf.mxu0
  %v359 = vadd.f32 0.0, %v358
  %v360 = vpop.f32.mrf.mxu0
  %361 = vmatprep.mubr.f32.mxu0 0.0
  %362 = vmatmul.mubr.f32.gmra.mxu0 %v116
  %v363 = vpop.f32.mrf.mxu0
  %v364 = vadd.f32 0.0, %v363
  %v365 = vpop.f32.mrf.mxu0
  %366 = vmatprep.mubr.f32.mxu0 0.0
  %367 = vmatmul.mubr.f32.gmra.mxu0 %v119
  %v368 = vpop.f32.mrf.mxu0
  %v369 = vadd.f32 0.0, %v368
  %v370 = vpop.f32.mrf.mxu0
  %371 = vmatprep.mubr.f32.mxu0 0.0
  %372 = vmatmul.mubr.f32.gmra.mxu0 %v122
  %v373 = vpop.f32.mrf.mxu0
  %v374 = vadd.f32 0.0, %v373
  %v375 = vpop.f32.mrf.mxu0
  %376 = vmatprep.mubr.f32.mxu0 0.0
  %377 = vmatmul.mubr.f32.gmra.mxu0 %v125
  %v378 = vpop.f32.mrf.mxu0
  %v379 = vadd.f32 0.0, %v378
  %v380 = vpop.f32.mrf.mxu0
  %381 = vmatprep.mubr.f32.mxu0 0.0
  %382 = vmatmul.mubr.f32.gmra.mxu0 %v128
  %v383 = vpop.f32.mrf.mxu0
  %v384 = vadd.f32 0.0, %v383
  %v385 = vpop.f32.mrf.mxu0
  %386 = vmatprep.mubr.f32.mxu0 0.0
  %387 = vmatmul.mubr.f32.gmra.mxu0 %v131
  %v388 = vpop.f32.mrf.mxu0
  %v389 = vadd.f32 0.0, %v388
  %v390 = vpop.f32.mrf.mxu0
  %391 = vmatprep.mubr.f32.mxu0 0.0
  %392 = vmatmul.mubr.f32.gmra.mxu0 %v134
  %v393 = vpop.f32.mrf.mxu0
  %v394 = vadd.f32 0.0, %v393
  %v395 = vpop.f32.mrf.mxu0
  %396 = vmatprep.mubr.f32.mxu0 0.0
  %397 = vmatmul.mubr.f32.gmra.mxu0 %v137
  %v398 = vpop.f32.mrf.mxu0
  %v399 = vadd.f32 0.0, %v398
  %v400 = vpop.f32.mrf.mxu0
  %401 = vmatprep.mubr.f32.mxu0 0.0
  %402 = vmatmul.mubr.f32.gmra.mxu0 %v140
  %v403 = vpop.f32.mrf.mxu0
  %v404 = vadd.f32 0.0, %v403
  %v405 = vpop.f32.mrf.mxu0
  %406 = vmatprep.mubr.f32.mxu0 0.0
  %407 = vmatmul.mubr.f32.gmra.mxu0 %v143
  %v408 = vpop.f32.mrf.mxu0
  %v409 = vadd.f32 0.0, %v408
  %v410 = vpop.f32.mrf.mxu0
  %411 = vmatprep.mubr.f32.mxu0 0.0
  %412 = vmatmul.mubr.f32.gmra.mxu0 %v146
  %v413 = vpop.f32.mrf.mxu0
  %v414 = vadd.f32 0.0, %v413
  %v415 = vpop.f32.mrf.mxu0
  %416 = vmatprep.mubr.f32.mxu0 0.0
  %417 = vmatmul.mubr.f32.gmra.mxu0 %v149
  %v418 = vpop.f32.mrf.mxu0
  %v419 = vadd.f32 0.0, %v418
  %v420 = vpop.f32.mrf.mxu0
  %421 = vmatprep.mubr.f32.mxu0 0.0
  %422 = vmatmul.mubr.f32.gmra.mxu0 %v152
  %v423 = vpop.f32.mrf.mxu0
  %v424 = vadd.f32 0.0, %v423
  %v425 = vpop.f32.mrf.mxu0
  %426 = vmatprep.mubr.f32.mxu0 0.0
  %427 = vmatmul.mubr.f32.gmra.mxu0 %v155
  %v428 = vpop.f32.mrf.mxu0
  %v429 = vadd.f32 0.0, %v428
  %v430 = vpop.f32.mrf.mxu0
  %431 = vmatprep.mubr.f32.mxu0 0.0
  %432 = vmatmul.mubr.f32.gmra.mxu0 %v158
  %v433 = vpop.f32.mrf.mxu0
  %v434 = vadd.f32 0.0, %v433
  %v435 = vpop.f32.mrf.mxu0
  %436 = vmatprep.mubr.f32.mxu0 0.0
  %437 = vmatmul.mubr.f32.gmra.mxu0 %v161
  %v438 = vpop.f32.mrf.mxu0
  %v439 = vadd.f32 0.0, %v438
  %v440 = vpop.f32.mrf.mxu0
  %441 = vmatprep.mubr.f32.mxu0 0.0
  %442 = vmatmul.mubr.f32.gmra.mxu0 %v164
  %v443 = vpop.f32.mrf.mxu0
  %v444 = vadd.f32 0.0, %v443
  %v445 = vpop.f32.mrf.mxu0
  %446 = vmatprep.mubr.f32.mxu0 0.0
  %447 = vmatmul.mubr.f32.gmra.mxu0 %v167
  %v448 = vpop.f32.mrf.mxu0
  %v449 = vadd.f32 0.0, %v448
  %v450 = vpop.f32.mrf.mxu0
  %451 = vmatprep.mubr.f32.mxu0 0.0
  %452 = vmatmul.mubr.f32.gmra.mxu0 %v170
  %v453 = vpop.f32.mrf.mxu0
  %v454 = vadd.f32 0.0, %v453
  %v455 = vpop.f32.mrf.mxu0
  %456 = vmatprep.mubr.f32.mxu0 0.0
  %457 = vmatmul.mubr.f32.gmra.mxu0 %v173
  %v458 = vpop.f32.mrf.mxu0
  %v459 = vadd.f32 0.0, %v458
  %v460 = vpop.f32.mrf.mxu0
  %461 = vmatprep.mubr.f32.mxu0 0.0
  %462 = vmatmul.mubr.f32.gmra.mxu0 %v176
  %v463 = vpop.f32.mrf.mxu0
  %v464 = vadd.f32 0.0, %v463
  %v465 = vpop.f32.mrf.mxu0
  %466 = vmatprep.mubr.f32.mxu0 0.0
  %467 = vmatmul.mubr.f32.gmra.mxu0 %v179
  %v468 = vpop.f32.mrf.mxu0
  %v469 = vadd.f32 0.0, %v468
  %v470 = vpop.f32.mrf.mxu0
  %471 = vmatprep.mubr.f32.mxu0 0.0
  %472 = vmatmul.mubr.f32.gmra.mxu0 %v182
  %v473 = vpop.f32.mrf.mxu0
  %v474 = vadd.f32 0.0, %v473
  %v475 = vpop.f32.mrf.mxu0
  %476 = vmatprep.mubr.f32.mxu0 0.0
  %477 = vmatmul.mubr.f32.gmra.mxu0 %v185
  %v478 = vpop.f32.mrf.mxu0
  %v479 = vadd.f32 0.0, %v478
  %v480 = vpop.f32.mrf.mxu0
  %481 = vmatprep.mubr.f32.mxu0 0.0
  %482 = vmatmul.mubr.f32.gmra.mxu0 %v188
  %v483 = vpop.f32.mrf.mxu0
  %v484 = vadd.f32 0.0, %v483
  %v485 = vpop.f32.mrf.mxu0
  %486 = vmatprep.mubr.f32.mxu0 0.0
  %487 = vmatmul.mubr.f32.gmra.mxu0 %v191
  %v488 = vpop.f32.mrf.mxu0
  %v489 = vadd.f32 0.0, %v488
  %v490 = vpop.f32.mrf.mxu0
  %491 = vmatprep.mubr.f32.mxu0 0.0
  %492 = vmatmul.mubr.f32.gmra.mxu0 %v194
  %v493 = vpop.f32.mrf.mxu0
  %v494 = vadd.f32 0.0, %v493
  %v495 = vpop.f32.mrf.mxu0
  %496 = vmatprep.mubr.f32.mxu0 0.0
  %497 = vmatmul.mubr.f32.gmra.mxu0 %v197
  %v498 = vpop.f32.mrf.mxu0
  %v499 = vadd.f32 0.0, %v498
  %v500 = vpop.f32.mrf.mxu0
  %501 = vmatprep.mubr.f32.mxu0 0.0
  %502 = vmatmul.mubr.f32.gmra.mxu0 %v200
  %v503 = vpop.f32.mrf.mxu0
  %v504 = vadd.f32 0.0, %v503
  %v505 = vpop.f32.mrf.mxu0
  %506 = vmatprep.mubr.f32.mxu0 0.0
  %507 = vmatmul.mubr.f32.gmra.mxu0 %v203
  %v508 = vpop.f32.mrf.mxu0
  %v509 = vadd.f32 0.0, %v508
  %v510 = vpop.f32.mrf.mxu0
  %511 = vmatprep.mubr.f32.mxu0 0.0
  %512 = vmatmul.mubr.f32.gmra.mxu0 %v206
  %v513 = vpop.f32.mrf.mxu0
  %v514 = vadd.f32 0.0, %v513
  %v515 = vpop.f32.mrf.mxu0
  %516 = vdwg.mxu0
  %v517 = vld [vmem:[%s0] sm:$0xff]
  %v518 = vld [vmem:[%s0 + $0x8] sm:$0xff]
  %v519 = vld [vmem:[%s0 + $0x10] sm:$0xff]
  %v520 = vld [vmem:[%s0 + $0x18] sm:$0xff]
  %v521 = vld [vmem:[%s0 + $0x20] sm:$0xff]
  %v522 = vld [vmem:[%s0 + $0x28] sm:$0xff]
  %v523 = vld [vmem:[%s0 + $0x30] sm:$0xff]
  %v524 = vld [vmem:[%s0 + $0x38] sm:$0xff]
  %v525 = vld [vmem:[%s0 + $0x40] sm:$0xff]
  %v526 = vld [vmem:[%s0 + $0x48] sm:$0xff]
  %v527 = vld [vmem:[%s0 + $0x50] sm:$0xff]
  %v528 = vld [vmem:[%s0 + $0x58] sm:$0xff]
  %v529 = vld [vmem:[%s0 + $0x60] sm:$0xff]
  %v530 = vld [vmem:[%s0 + $0x68] sm:$0xff]
  %v531 = vld [vmem:[%s0 + $0x70] sm:$0xff]
  %v532 = vld [vmem:[%s0 + $0x78] sm:$0xff]
  %v533 = vld [vmem:[%s0 + $0x80] sm:$0xff]
  %v534 = vld [vmem:[%s0 + $0x88] sm:$0xff]
  %v535 = vld [vmem:[%s0 + $0x90] sm:$0xff]
  %v536 = vld [vmem:[%s0 + $0x98] sm:$0xff]
  %v537 = vld [vmem:[%s0 + $0xa0] sm:$0xff]
  %v538 = vld [vmem:[%s0 + $0xa8] sm:$0xff]
  %v539 = vld [vmem:[%s0 + $0xb0] sm:$0xff]
  %v540 = vld [vmem:[%s0 + $0xb8] sm:$0xff]
  %v541 = vld [vmem:[%s0 + $0xc0] sm:$0xff]
  %v542 = vld [vmem:[%s0 + $0xc8] sm:$0xff]
  %v543 = vld [vmem:[%s0 + $0xd0] sm:$0xff]
  %v544 = vld [vmem:[%s0 + $0xd8] sm:$0xff]
  %v545 = vld [vmem:[%s0 + $0xe0] sm:$0xff]
  %v546 = vld [vmem:[%s0 + $0xe8] sm:$0xff]
  %v547 = vld [vmem:[%s0 + $0xf0] sm:$0xff]
  %v548 = vld [vmem:[%s0 + $0xf8] sm:$0xff]
  %v549 = vld [vmem:[%s0 + $0x100] sm:$0xff]
  %v550 = vld [vmem:[%s0 + $0x108] sm:$0xff]
  %v551 = vld [vmem:[%s0 + $0x110] sm:$0xff]
  %v552 = vld [vmem:[%s0 + $0x118] sm:$0xff]
  %v553 = vld [vmem:[%s0 + $0x120] sm:$0xff]
  %v554 = vld [vmem:[%s0 + $0x128] sm:$0xff]
  %v555 = vld [vmem:[%s0 + $0x130] sm:$0xff]
  %v556 = vld [vmem:[%s0 + $0x138] sm:$0xff]
  %v557 = vld [vmem:[%s0 + $0x140] sm:$0xff]
  %v558 = vld [vmem:[%s0 + $0x148] sm:$0xff]
  %v559 = vld [vmem:[%s0 + $0x150] sm:$0xff]
  %v560 = vld [vmem:[%s0 + $0x158] sm:$0xff]
  %v561 = vld [vmem:[%s0 + $0x160] sm:$0xff]
  %v562 = vld [vmem:[%s0 + $0x168] sm:$0xff]
  %v563 = vld [vmem:[%s0 + $0x170] sm:$0xff]
  %v564 = vld [vmem:[%s0 + $0x178] sm:$0xff]
  %v565 = vmul.f32 %v279, %v517
  %v566 = vmul.f32 %v284, %v518
  %v567 = vmul.f32 %v289, %v519
  %v568 = vmul.f32 %v294, %v520
  %v569 = vmul.f32 %v299, %v521
  %v570 = vmul.f32 %v304, %v522
  %v571 = vmul.f32 %v309, %v523
  %v572 = vmul.f32 %v314, %v524
  %v573 = vmul.f32 %v319, %v525
  %v574 = vmul.f32 %v324, %v526
  %v575 = vmul.f32 %v329, %v527
  %v576 = vmul.f32 %v334, %v528
  %v577 = vmul.f32 %v339, %v529
  %v578 = vmul.f32 %v344, %v530
  %v579 = vmul.f32 %v349, %v531
  %v580 = vmul.f32 %v354, %v532
  %v581 = vmul.f32 %v359, %v533
  %v582 = vmul.f32 %v364, %v534
  %v583 = vmul.f32 %v369, %v535
  %v584 = vmul.f32 %v374, %v536
  %v585 = vmul.f32 %v379, %v537
  %v586 = vmul.f32 %v384, %v538
  %v587 = vmul.f32 %v389, %v539
  %v588 = vmul.f32 %v394, %v540
  %v589 = vmul.f32 %v399, %v541
  %v590 = vmul.f32 %v404, %v542
  %v591 = vmul.f32 %v409, %v543
  %v592 = vmul.f32 %v414, %v544
  %v593 = vmul.f32 %v419, %v545
  %v594 = vmul.f32 %v424, %v546
  %v595 = vmul.f32 %v429, %v547
  %v596 = vmul.f32 %v434, %v548
  %v597 = vmul.f32 %v439, %v549
  %v598 = vmul.f32 %v444, %v550
  %v599 = vmul.f32 %v449, %v551
  %v600 = vmul.f32 %v454, %v552
  %v601 = vmul.f32 %v459, %v553
  %v602 = vmul.f32 %v464, %v554
  %v603 = vmul.f32 %v469, %v555
  %v604 = vmul.f32 %v474, %v556
  %v605 = vmul.f32 %v479, %v557
  %v606 = vmul.f32 %v484, %v558
  %v607 = vmul.f32 %v489, %v559
  %v608 = vmul.f32 %v494, %v560
  %v609 = vmul.f32 %v499, %v561
  %v610 = vmul.f32 %v504, %v562
  %v611 = vmul.f32 %v509, %v563
  %v612 = vmul.f32 %v514, %v564
  %v613 = vpack.c.bf16 %v566, %v565
  %v614 = vpack.c.bf16 %v568, %v567
  %v615 = vpack.c.bf16 %v570, %v569
  %v616 = vpack.c.bf16 %v572, %v571
  %v617 = vpack.c.bf16 %v574, %v573
  %v618 = vpack.c.bf16 %v576, %v575
  %v619 = vpack.c.bf16 %v578, %v577
  %v620 = vpack.c.bf16 %v580, %v579
  %v621 = vpack.c.bf16 %v582, %v581
  %v622 = vpack.c.bf16 %v584, %v583
  %v623 = vpack.c.bf16 %v586, %v585
  %v624 = vpack.c.bf16 %v588, %v587
  %v625 = vpack.c.bf16 %v590, %v589
  %v626 = vpack.c.bf16 %v592, %v591
  %v627 = vpack.c.bf16 %v594, %v593
  %v628 = vpack.c.bf16 %v596, %v595
  %v629 = vpack.c.bf16 %v598, %v597
  %v630 = vpack.c.bf16 %v600, %v599
  %v631 = vpack.c.bf16 %v602, %v601
  %v632 = vpack.c.bf16 %v604, %v603
  %v633 = vpack.c.bf16 %v606, %v605
  %v634 = vpack.c.bf16 %v608, %v607
  %v635 = vpack.c.bf16 %v610, %v609
  %v636 = vpack.c.bf16 %v612, %v611
  %v661 = vunpack.c.l.b16 %v613
  %v662 = vunpack.c.h.b16 %v613
  %v663 = vunpack.c.l.b16 %v614
  %v664 = vunpack.c.h.b16 %v614
  %v665 = vunpack.c.l.b16 %v615
  %v666 = vunpack.c.h.b16 %v615
  %v667 = vunpack.c.l.b16 %v616
  %v668 = vunpack.c.h.b16 %v616
  %v669 = vunpack.c.l.b16 %v617
  %v670 = vunpack.c.h.b16 %v617
  %v671 = vunpack.c.l.b16 %v618
  %v672 = vunpack.c.h.b16 %v618
  %v673 = vunpack.c.l.b16 %v619
  %v674 = vunpack.c.h.b16 %v619
  %v675 = vunpack.c.l.b16 %v620
  %v676 = vunpack.c.h.b16 %v620
  %v677 = vunpack.c.l.b16 %v621
  %v678 = vunpack.c.h.b16 %v621
  %v679 = vunpack.c.l.b16 %v622
  %v680 = vunpack.c.h.b16 %v622
  %v681 = vunpack.c.l.b16 %v623
  %v682 = vunpack.c.h.b16 %v623
  %v683 = vunpack.c.l.b16 %v624
  %v684 = vunpack.c.h.b16 %v624
  %v685 = vunpack.c.l.b16 %v625
  %v686 = vunpack.c.h.b16 %v625
  %v687 = vunpack.c.l.b16 %v626
  %v688 = vunpack.c.h.b16 %v626
  %v689 = vunpack.c.l.b16 %v627
  %v690 = vunpack.c.h.b16 %v627
  %v691 = vunpack.c.l.b16 %v628
  %v692 = vunpack.c.h.b16 %v628
  %v693 = vunpack.c.l.b16 %v629
  %v694 = vunpack.c.h.b16 %v629
  %v695 = vunpack.c.l.b16 %v630
  %v696 = vunpack.c.h.b16 %v630
  %v697 = vunpack.c.l.b16 %v631
  %v698 = vunpack.c.h.b16 %v631
  %v699 = vunpack.c.l.b16 %v632
  %v700 = vunpack.c.h.b16 %v632
  %v701 = vunpack.c.l.b16 %v633
  %v702 = vunpack.c.h.b16 %v633
  %v703 = vunpack.c.l.b16 %v634
  %v704 = vunpack.c.h.b16 %v634
  %v705 = vunpack.c.l.b16 %v635
  %v706 = vunpack.c.h.b16 %v635
  %v707 = vunpack.c.l.b16 %v636
  %v708 = vunpack.c.h.b16 %v636
  %v709 = vpack.c.b16 %v661, %v661
  %v710 = vpack.c.b16 %v662, %v662
  %v711 = vpack.c.b16 %v663, %v663
  %v712 = vpack.c.b16 %v664, %v664
  %v713 = vpack.c.b16 %v665, %v665
  %v714 = vpack.c.b16 %v666, %v666
  %v715 = vpack.c.b16 %v667, %v667
  %v716 = vpack.c.b16 %v668, %v668
  %v717 = vpack.c.b16 %v669, %v669
  %v718 = vpack.c.b16 %v670, %v670
  %v719 = vpack.c.b16 %v671, %v671
  %v720 = vpack.c.b16 %v672, %v672
  %v721 = vpack.c.b16 %v673, %v673
  %v722 = vpack.c.b16 %v674, %v674
  %v723 = vpack.c.b16 %v675, %v675
  %v724 = vpack.c.b16 %v676, %v676
  %v725 = vpack.c.b16 %v677, %v677
  %v726 = vpack.c.b16 %v678, %v678
  %v727 = vpack.c.b16 %v679, %v679
  %v728 = vpack.c.b16 %v680, %v680
  %v729 = vpack.c.b16 %v681, %v681
  %v730 = vpack.c.b16 %v682, %v682
  %v731 = vpack.c.b16 %v683, %v683
  %v732 = vpack.c.b16 %v684, %v684
  %v733 = vpack.c.b16 %v685, %v685
  %v734 = vpack.c.b16 %v686, %v686
  %v735 = vpack.c.b16 %v687, %v687
  %v736 = vpack.c.b16 %v688, %v688
  %v737 = vpack.c.b16 %v689, %v689
  %v738 = vpack.c.b16 %v690, %v690
  %v739 = vpack.c.b16 %v691, %v691
  %v740 = vpack.c.b16 %v692, %v692
  %v741 = vpack.c.b16 %v693, %v693
  %v742 = vpack.c.b16 %v694, %v694
  %v743 = vpack.c.b16 %v695, %v695
  %v744 = vpack.c.b16 %v696, %v696
  %v745 = vpack.c.b16 %v697, %v697
  %v746 = vpack.c.b16 %v698, %v698
  %v747 = vpack.c.b16 %v699, %v699
  %v748 = vpack.c.b16 %v700, %v700
  %v749 = vpack.c.b16 %v701, %v701
  %v750 = vpack.c.b16 %v702, %v702
  %v751 = vpack.c.b16 %v703, %v703
  %v752 = vpack.c.b16 %v704, %v704
  %v753 = vpack.c.b16 %v705, %v705
  %v754 = vpack.c.b16 %v706, %v706
  %v755 = vpack.c.b16 %v707, %v707
  %v756 = vpack.c.b16 %v708, %v708
  %vm805 = vcmask 519168
  %806 = vst.msk [vmem:[%s3] sm:$0xf] %vm805, %v709
  %807 = vst.msk [vmem:[%s3 + $0x4] sm:$0xf] %vm805, %v710
  %808 = vst.msk [vmem:[%s3 + $0x8] sm:$0xf] %vm805, %v711
  %809 = vst.msk [vmem:[%s3 + $0xc] sm:$0xf] %vm805, %v712
  %810 = vst.msk [vmem:[%s3 + $0x10] sm:$0xf] %vm805, %v713
  %811 = vst.msk [vmem:[%s3 + $0x14] sm:$0xf] %vm805, %v714
  %812 = vst.msk [vmem:[%s3 + $0x18] sm:$0xf] %vm805, %v715
  %813 = vst.msk [vmem:[%s3 + $0x1c] sm:$0xf] %vm805, %v716
  %814 = vst.msk [vmem:[%s3 + $0x20] sm:$0xf] %vm805, %v717
  %815 = vst.msk [vmem:[%s3 + $0x24] sm:$0xf] %vm805, %v718
  %816 = vst.msk [vmem:[%s3 + $0x28] sm:$0xf] %vm805, %v719
  %817 = vst.msk [vmem:[%s3 + $0x2c] sm:$0xf] %vm805, %v720
  %818 = vst.msk [vmem:[%s3 + $0x30] sm:$0xf] %vm805, %v721
  %819 = vst.msk [vmem:[%s3 + $0x34] sm:$0xf] %vm805, %v722
  %820 = vst.msk [vmem:[%s3 + $0x38] sm:$0xf] %vm805, %v723
  %821 = vst.msk [vmem:[%s3 + $0x3c] sm:$0xf] %vm805, %v724
  %822 = vst.msk [vmem:[%s3 + $0x40] sm:$0xf] %vm805, %v725
  %823 = vst.msk [vmem:[%s3 + $0x44] sm:$0xf] %vm805, %v726
  %824 = vst.msk [vmem:[%s3 + $0x48] sm:$0xf] %vm805, %v727
  %825 = vst.msk [vmem:[%s3 + $0x4c] sm:$0xf] %vm805, %v728
  %826 = vst.msk [vmem:[%s3 + $0x50] sm:$0xf] %vm805, %v729
  %827 = vst.msk [vmem:[%s3 + $0x54] sm:$0xf] %vm805, %v730
  %828 = vst.msk [vmem:[%s3 + $0x58] sm:$0xf] %vm805, %v731
  %829 = vst.msk [vmem:[%s3 + $0x5c] sm:$0xf] %vm805, %v732
  %830 = vst.msk [vmem:[%s3 + $0x60] sm:$0xf] %vm805, %v733
  %831 = vst.msk [vmem:[%s3 + $0x64] sm:$0xf] %vm805, %v734
  %832 = vst.msk [vmem:[%s3 + $0x68] sm:$0xf] %vm805, %v735
  %833 = vst.msk [vmem:[%s3 + $0x6c] sm:$0xf] %vm805, %v736
  %834 = vst.msk [vmem:[%s3 + $0x70] sm:$0xf] %vm805, %v737
  %835 = vst.msk [vmem:[%s3 + $0x74] sm:$0xf] %vm805, %v738
  %836 = vst.msk [vmem:[%s3 + $0x78] sm:$0xf] %vm805, %v739
  %837 = vst.msk [vmem:[%s3 + $0x7c] sm:$0xf] %vm805, %v740
  %838 = vst.msk [vmem:[%s3 + $0x80] sm:$0xf] %vm805, %v741
  %839 = vst.msk [vmem:[%s3 + $0x84] sm:$0xf] %vm805, %v742
  %840 = vst.msk [vmem:[%s3 + $0x88] sm:$0xf] %vm805, %v743
  %841 = vst.msk [vmem:[%s3 + $0x8c] sm:$0xf] %vm805, %v744
  %842 = vst.msk [vmem:[%s3 + $0x90] sm:$0xf] %vm805, %v745
  %843 = vst.msk [vmem:[%s3 + $0x94] sm:$0xf] %vm805, %v746
  %844 = vst.msk [vmem:[%s3 + $0x98] sm:$0xf] %vm805, %v747
  %845 = vst.msk [vmem:[%s3 + $0x9c] sm:$0xf] %vm805, %v748
  %846 = vst.msk [vmem:[%s3 + $0xa0] sm:$0xf] %vm805, %v749
  %847 = vst.msk [vmem:[%s3 + $0xa4] sm:$0xf] %vm805, %v750
  %848 = vst.msk [vmem:[%s3 + $0xa8] sm:$0xf] %vm805, %v751
  %849 = vst.msk [vmem:[%s3 + $0xac] sm:$0xf] %vm805, %v752
  %850 = vst.msk [vmem:[%s3 + $0xb0] sm:$0xf] %vm805, %v753
  %851 = vst.msk [vmem:[%s3 + $0xb4] sm:$0xf] %vm805, %v754
  %852 = vst.msk [vmem:[%s3 + $0xb8] sm:$0xf] %vm805, %v755
  %853 = vst.msk [vmem:[%s3 + $0xbc] sm:$0xf] %vm805, %v756
  // Predicated region
  $region14: #{tpu_custom_call.1} parent=0 // pred_check
    _
  $region15: #{tpu_custom_call.1} parent=0 // pred_check_branch
    %855 = sbr.rel (0) target = $region17
  $region16: #{tpu_custom_call.1} parent=0 // pred_region
    _
  $region17: #{tpu_custom_call.1} parent=0 // pred_fallthru
    _
  // Predicated region
  $region18: #{tpu_custom_call.1} parent=0 // pred_check
    _
  $region19: #{tpu_custom_call.1} parent=0 // pred_check_branch
    %857 = sbr.rel (0) target = $region21
  $region20: #{tpu_custom_call.1} parent=0 // pred_region
    _
  $region21: #{tpu_custom_call.1} parent=0 // pred_fallthru
    _

</llo_original>
